<compile_context>
chip_gen: v6e
topology: v6e:2x2x1
jax: 0.10.0
libtpu: 0.0.40
codegen_flags: <defaults>
</compile_context>

<pallas_src>
import jax
import jax.numpy as jnp
from jax.experimental import pallas as pl
from jax.experimental.pallas import tpu as pltpu


def channel_gate_kernel(x_ref, w1_ref, b1_ref, w2_ref, b2_ref, o_ref):
    # x_ref: (Bt, C, HW) native dtype; w1_ref: (C, Ch) with 1/(H*W) pre-folded;
    # b1_ref: (1, Ch); w2_ref: (Ch, C); b2_ref: (1, C); o_ref: (Bt, C, HW).
    x = x_ref[...]                                            # (Bt, C, HW)

    # Global average pool: f32-accumulated sum over the lane (spatial) axis;
    # the mean's 1/(H*W) factor was folded into w1 by the wrapper.
    pooled = jnp.sum(x, axis=-1, dtype=jnp.float32)           # (Bt, C)

    # Tiny MLP: Linear(C -> C//r) + ReLU + Linear(C//r -> C).
    h = jnp.dot(pooled, w1_ref[...], preferred_element_type=jnp.float32)
    h = jnp.maximum(h + b1_ref[...], 0.0)                     # (Bt, Ch)
    att = jnp.dot(h, w2_ref[...], preferred_element_type=jnp.float32)
    att = att + b2_ref[...]                                   # (Bt, C)

    # Sigmoid gate; rescale in the input's native dtype (no f32 upcast of x).
    scale = jax.nn.sigmoid(att).astype(x.dtype)               # (Bt, C)
    o_ref[...] = x * scale[:, :, None]


def _tpu_generation_params():
    """Best-effort (physical VMEM bytes, TensorCores per device)."""
    vmem_phys = 64 << 20  # conservative default = smallest (v7x per-TC VMEM)
    try:
        info = pltpu.get_tpu_info()
        vmem_phys = int(getattr(info, "vmem_capacity_bytes", vmem_phys))
    except Exception:
        pass
    kind = ""
    try:
        kind = jax.devices()[0].device_kind.lower()
    except Exception:
        pass
    # Chips whose TensorCores shard a "parallel" grid axis (megacore-style).
    num_tc = 2 if any(t in kind for t in ("v4", "v5p", "v7")) else 1
    return vmem_phys, num_tc


def _pick_batch_tile(B, sample_bytes, x_budget_bytes, num_tc):
    """Largest batch tile whose double-buffered in+out x blocks fit the budget,
    with a balanced-grid preference only on multi-TensorCore chips."""
    max_bt = max(1, int(x_budget_bytes) // (4 * sample_bytes))
    bt = min(B, max_bt)
    if num_tc > 1 and B >= 2 * num_tc:
        # Give each TensorCore at least ~2 grid steps of work...
        bt = min(bt, pl.cdiv(B, 2 * num_tc))
        # ...and make the grid length a multiple of num_tc when shrinking the
        # tile by at most ~2x achieves it (balanced megacore sharding).
        for cand in range(bt, max(1, bt // 2) - 1, -1):
            if pl.cdiv(B, cand) % num_tc == 0:
                bt = cand
                break
    return max(1, bt)


@jax.jit
def channel_gate_forward(x, w1, b1, w2, b2):
    """x: (B, C, H, W) (NCHW, as in PyTorch).
    w1: (C, Ch) = Linear1.weight.T, b1: (1, Ch),
    w2: (Ch, C) = Linear2.weight.T, b2: (1, C)."""
    B, C, H, W = x.shape
    HW = H * W
    Ch = w1.shape[1]
    itemsize = x.dtype.itemsize

    # Flatten spatial onto the lane axis.  Contiguous reshape -> free.  The
    # full HW extent is the block dim, so no pad/slice even if HW % 128 != 0.
    x_flat = x.reshape(B, C, HW)

    # Fold the 1/(H*W) mean factor into w1; keep MLP params in f32.
    w1_s = w1.astype(jnp.float32) * (1.0 / float(HW))
    b1_f = b1.astype(jnp.float32).reshape(1, Ch)
    w2_f = w2.astype(jnp.float32).reshape(Ch, C)
    b2_f = b2.astype(jnp.float32).reshape(1, C)
    weight_bytes = 4 * (w1_s.size + b1_f.size + w2_f.size + b2_f.size)

    # Generation-aware VMEM budgeting.
    vmem_phys, num_tc = _tpu_generation_params()
    vmem_cap = min(vmem_phys * 3 // 4, 96 << 20)       # scoped-limit ceiling
    x_budget = min(vmem_cap - (4 << 20), 48 << 20)     # budget for x blocks

    sample_bytes = C * HW * itemsize
    single_buffer_x = 4 * sample_bytes > x_budget
    if single_buffer_x:
        # One sample's in+out blocks don't fit double-buffered (e.g. v7x's
        # 64 MiB VMEM with large C*HW): single-buffer the x specs instead of
        # OOMing / spilling.
        # TODO(synk): for samples exceeding even single-buffered VMEM, stream
        # HW chunks with pltpu.emit_pipeline over a pl.ANY x ref.
        Bt = 1
        x_buffer_bytes = 2 * sample_bytes
    else:
        Bt = _pick_batch_tile(B, sample_bytes, x_budget, num_tc)
        x_buffer_bytes = 4 * Bt * sample_bytes
    grid = (pl.cdiv(B, Bt),)

    vmem_limit = int(min(
        max(x_buffer_bytes + 2 * weight_bytes + (2 << 20), 16 << 20),
        vmem_cap))

    x_spec_kwargs = dict(pipeline_mode=pl.Buffered(1)) if single_buffer_x else {}
    x_in_spec = pl.BlockSpec((Bt, C, HW), lambda b: (b, 0, 0), **x_spec_kwargs)
    x_out_spec = pl.BlockSpec((Bt, C, HW), lambda b: (b, 0, 0), **x_spec_kwargs)

    cost = pl.CostEstimate(
        flops=int(2 * B * C * HW + 4 * B * C * Ch),
        transcendentals=int(B * C),
        bytes_accessed=int(2 * B * C * HW * itemsize + weight_bytes),
    )

    out_flat = pl.pallas_call(
        channel_gate_kernel,
        out_shape=jax.ShapeDtypeStruct((B, C, HW), x.dtype),
        grid_spec=pltpu.PrefetchScalarGridSpec(
            num_scalar_prefetch=0,
            grid=grid,
            in_specs=[
                x_in_spec,                                   # x tile
                pl.BlockSpec((C, Ch), lambda b: (0, 0)),     # W1^T / HW
                pl.BlockSpec((1, Ch), lambda b: (0, 0)),     # b1
                pl.BlockSpec((Ch, C), lambda b: (0, 0)),     # W2^T
                pl.BlockSpec((1, C), lambda b: (0, 0)),      # b2
            ],
            out_specs=x_out_spec,
        ),
        compiler_params=pltpu.CompilerParams(
            dimension_semantics=("parallel",),
            vmem_limit_bytes=vmem_limit),
        cost_estimate=cost,
    )(x_flat, w1_s, b1_f, w2_f, b2_f)

    return out_flat.reshape(B, C, H, W)


def channel_gate_reference(x, w1, b1, w2, b2):
    """Pure-JAX reference matching the PyTorch module semantics."""
    avg = jnp.mean(x, axis=(2, 3))                            # (B, C)
    h = jnp.maximum(avg @ w1 + b1, 0.0)                       # (B, Ch)
    att = h @ w2 + b2                                         # (B, C)
    return x * jax.nn.sigmoid(att)[:, :, None, None]


if __name__ == "__main__":
    # ChannelGate(gate_channels=32, reduction_ratio=16) -> hidden = 2.
    # H*W = 143 (not a multiple of 128) exercises the no-pad / full-extent
    # block path; B = 6 exercises the cdiv / balanced-grid tiling.
    B, C, H, W = 6, 32, 13, 11
    reduction_ratio = 16
    Ch = C // reduction_ratio

    key = jax.random.PRNGKey(0)
    kx, kw1, kb1, kw2, kb2 = jax.random.split(key, 5)

    x = jax.random.normal(kx, (B, C, H, W), dtype=jnp.float32)

    # PyTorch Linear weight is (out, in); we pass the transposed (in, out) form
    # so the kernel computes pooled @ W^T directly.
    w1 = jax.random.normal(kw1, (C, Ch), dtype=jnp.float32) * 0.1
    b1 = jax.random.normal(kb1, (1, Ch), dtype=jnp.float32) * 0.1
    w2 = jax.random.normal(kw2, (Ch, C), dtype=jnp.float32) * 0.1
    b2 = jax.random.normal(kb2, (1, C), dtype=jnp.float32) * 0.1

    out = jax.block_until_ready(channel_gate_forward(x, w1, b1, w2, b2))

    ref = channel_gate_reference(x, w1, b1[0], w2, b2[0])
    assert out.shape == (B, C, H, W)
    assert jnp.allclose(out, ref, atol=1e-5, rtol=1e-5), "mismatch vs reference"

    print("KERNEL_OK")
</pallas_src>

<mosaic_0001>
module attributes {stable_mosaic.version = 11 : i64} {
  func.func @channel_gate_kernel(%arg0: i32, %arg1: memref<6x32x143xf32, #tpu.memory_space<vmem>>, %arg2: memref<32x2xf32, #tpu.memory_space<vmem>>, %arg3: memref<1x2xf32, #tpu.memory_space<vmem>>, %arg4: memref<2x32xf32, #tpu.memory_space<vmem>>, %arg5: memref<1x32xf32, #tpu.memory_space<vmem>>, %arg6: memref<6x32x143xf32, #tpu.memory_space<vmem>>) attributes {dimension_semantics = [#tpu.dimension_semantics<parallel>], iteration_bounds = array<i64: 1>, scalar_prefetch = 0 : i64, scratch_operands = 0 : i64, tpu.core_type = #tpu.core_type<tc>, window_params = [{transform_indices = @transform_0, window_bounds = array<i64: 6, 32, 143>}, {pipeline_mode = #tpu.pipeline_mode<synchronous>, transform_indices = @transform_1, window_bounds = array<i64: 32, 2>}, {pipeline_mode = #tpu.pipeline_mode<synchronous>, transform_indices = @transform_2, window_bounds = array<i64: 1, 2>}, {pipeline_mode = #tpu.pipeline_mode<synchronous>, transform_indices = @transform_3, window_bounds = array<i64: 2, 32>}, {pipeline_mode = #tpu.pipeline_mode<synchronous>, transform_indices = @transform_4, window_bounds = array<i64: 1, 32>}, {transform_indices = @transform_5, window_bounds = array<i64: 6, 32, 143>}]} {
    %c0 = arith.constant 0 : index
    %c0_0 = arith.constant 0 : index
    %c0_1 = arith.constant 0 : index
    %0 = vector.load %arg1[%c0, %c0_0, %c0_1] : memref<6x32x143xf32, #tpu.memory_space<vmem>>, vector<6x32x143xf32>
    %cst = arith.constant dense<0.000000e+00> : vector<6x32xf32>
    %1 = vector.multi_reduction <add>, %0, %cst [2] : vector<6x32x143xf32> to vector<6x32xf32>
    %c0_2 = arith.constant 0 : index
    %c0_3 = arith.constant 0 : index
    %2 = vector.load %arg2[%c0_2, %c0_3] : memref<32x2xf32, #tpu.memory_space<vmem>>, vector<32x2xf32>
    %cst_4 = arith.constant dense<0.000000e+00> : vector<6x2xf32>
    %3 = tpu.matmul %1, %2, %cst_4 {dimension_numbers = #tpu.dot_dimension_numbers<[1], [0], [0], [1], [0, 0, 1, 1], [], []>} : vector<6x32xf32>, vector<32x2xf32>, vector<6x2xf32> -> vector<6x2xf32>
    %c0_5 = arith.constant 0 : index
    %c0_6 = arith.constant 0 : index
    %4 = vector.load %arg3[%c0_5, %c0_6] : memref<1x2xf32, #tpu.memory_space<vmem>>, vector<1x2xf32>
    %5 = vector.broadcast %4 : vector<1x2xf32> to vector<6x2xf32>
    %6 = arith.addf %3, %5 : vector<6x2xf32>
    %cst_7 = arith.constant 0.000000e+00 : f32
    %7 = vector.broadcast %cst_7 : f32 to vector<6x2xf32>
    %8 = arith.maximumf %6, %7 : vector<6x2xf32>
    %c0_8 = arith.constant 0 : index
    %c0_9 = arith.constant 0 : index
    %9 = vector.load %arg4[%c0_8, %c0_9] : memref<2x32xf32, #tpu.memory_space<vmem>>, vector<2x32xf32>
    %cst_10 = arith.constant dense<0.000000e+00> : vector<6x32xf32>
    %10 = tpu.matmul %8, %9, %cst_10 {dimension_numbers = #tpu.dot_dimension_numbers<[1], [0], [0], [1], [0, 0, 1, 1], [], []>} : vector<6x2xf32>, vector<2x32xf32>, vector<6x32xf32> -> vector<6x32xf32>
    %c0_11 = arith.constant 0 : index
    %c0_12 = arith.constant 0 : index
    %11 = vector.load %arg5[%c0_11, %c0_12] : memref<1x32xf32, #tpu.memory_space<vmem>>, vector<1x32xf32>
    %12 = vector.broadcast %11 : vector<1x32xf32> to vector<6x32xf32>
    %13 = arith.addf %10, %12 : vector<6x32xf32>
    %14 = arith.negf %13 : vector<6x32xf32>
    %15 = math.exp %14 : vector<6x32xf32>
    %cst_13 = arith.constant 1.000000e+00 : f32
    %16 = vector.broadcast %cst_13 : f32 to vector<6x32xf32>
    %17 = arith.addf %16, %15 : vector<6x32xf32>
    %18 = arith.divf %16, %17 : vector<6x32xf32>
    %19 = vector.shape_cast %18 : vector<6x32xf32> to vector<6x32x1xf32>
    %20 = vector.broadcast %19 : vector<6x32x1xf32> to vector<6x32x143xf32>
    %21 = arith.mulf %0, %20 : vector<6x32x143xf32>
    %c0_14 = arith.constant 0 : index
    %c0_15 = arith.constant 0 : index
    %c0_16 = arith.constant 0 : index
    %22 = vector.load %arg6[%c0_14, %c0_15, %c0_16] : memref<6x32x143xf32, #tpu.memory_space<vmem>>, vector<6x32x143xf32>
    tpu.vector_store %arg6[%c0_14, %c0_15, %c0_16], %21 {strides = array<i32>} : memref<6x32x143xf32, #tpu.memory_space<vmem>>, vector<6x32x143xf32>,
    return
  }
  func.func @transform_0(%arg0: i32) -> (i32, i32, i32) {
    %c0_i32 = arith.constant 0 : i32
    %c0_i32_0 = arith.constant 0 : i32
    %c0_i32_1 = arith.constant 0 : i32
    return %arg0, %c0_i32, %c0_i32_0 : i32, i32, i32
  }
  func.func @transform_1(%arg0: i32) -> (i32, i32) {
    %c0_i32 = arith.constant 0 : i32
    %c0_i32_0 = arith.constant 0 : i32
    %c0_i32_1 = arith.constant 0 : i32
    return %c0_i32, %c0_i32_0 : i32, i32
  }
  func.func @transform_2(%arg0: i32) -> (i32, i32) {
    %c0_i32 = arith.constant 0 : i32
    %c0_i32_0 = arith.constant 0 : i32
    %c0_i32_1 = arith.constant 0 : i32
    return %c0_i32, %c0_i32_0 : i32, i32
  }
  func.func @transform_3(%arg0: i32) -> (i32, i32) {
    %c0_i32 = arith.constant 0 : i32
    %c0_i32_0 = arith.constant 0 : i32
    %c0_i32_1 = arith.constant 0 : i32
    return %c0_i32, %c0_i32_0 : i32, i32
  }
  func.func @transform_4(%arg0: i32) -> (i32, i32) {
    %c0_i32 = arith.constant 0 : i32
    %c0_i32_0 = arith.constant 0 : i32
    %c0_i32_1 = arith.constant 0 : i32
    return %c0_i32, %c0_i32_0 : i32, i32
  }
  func.func @transform_5(%arg0: i32) -> (i32, i32, i32) {
    %c0_i32 = arith.constant 0 : i32
    %c0_i32_0 = arith.constant 0 : i32
    %c0_i32_1 = arith.constant 0 : i32
    return %arg0, %c0_i32, %c0_i32_0 : i32, i32, i32
  }
}

</mosaic_0001>

<llo_original>
// kernel: channel_gate_forward.1
$region0: #{channel_gate_forward.1}
  #allocation0 [shape = 'u32[]', space=smem, size = 0x4, offset = 0x4, fixed_abs, tag = 'smem constant byte address 0x4 - core index']
  #allocation1 [shape = 'u32[144,128]{1,0:T(1,128)}', space=vmem, size = 0x12000, scoped, tag = 'internal scratch']
  %s0 = inlined_call_operand.vmem [shape: f32[6,32,143], index: 0, kind: input, shape index: {}]
  %s1 = inlined_call_operand.vmem [shape: f32[32,2], index: 1, kind: input, shape index: {}]
  %s2 = inlined_call_operand.vmem [shape: f32[1,2], index: 2, kind: input, shape index: {}]
  %s3 = inlined_call_operand.vmem [shape: f32[2,32], index: 3, kind: input, shape index: {}]
  %s4 = inlined_call_operand.vmem [shape: f32[1,32], index: 4, kind: input, shape index: {}]
  %s5 = inlined_call_operand.vmem [shape: f32[6,32,143], index: 5, kind: output, shape index: {}]
  %s6 = sld [smem:[#allocation0]]
  $region30: #{channel_gate_forward.1} parent=0
    _
  %s8 = ssub.s32 1, %s6
  %s9 = scalar_select 0, %s8, %s6
  // Predicated region
  $region2: #{channel_gate_forward.1} parent=0 // pred_check
    _
  $region3: #{channel_gate_forward.1} parent=0 // pred_check_branch
    %11 = sbr.rel (0) target = $region5
  $region4: #{channel_gate_forward.1} parent=0 // pred_region
    _
  $region5: #{channel_gate_forward.1} parent=0 // pred_fallthru
    _
  // Predicated region
  $region6: #{channel_gate_forward.1} parent=0 // pred_check
    _
  $region7: #{channel_gate_forward.1} parent=0 // pred_check_branch
    %13 = sbr.rel (0) target = $region9
  $region8: #{channel_gate_forward.1} parent=0 // pred_region
    _
  $region9: #{channel_gate_forward.1} parent=0 // pred_fallthru
    _
  // Predicated region
  $region10: #{channel_gate_forward.1} parent=0 // pred_check
    _
  $region11: #{channel_gate_forward.1} parent=0 // pred_check_branch
    %15 = sbr.rel (0) target = $region13
  $region12: #{channel_gate_forward.1} parent=0 // pred_region
    _
  $region13: #{channel_gate_forward.1} parent=0 // pred_fallthru
    _
  // Predicated region
  $region14: #{channel_gate_forward.1} parent=0 // pred_check
    _
  $region15: #{channel_gate_forward.1} parent=0 // pred_check_branch
    %17 = sbr.rel (0) target = $region17
  $region16: #{channel_gate_forward.1} parent=0 // pred_region
    _
  $region17: #{channel_gate_forward.1} parent=0 // pred_fallthru
    _
  // Predicated region
  $region18: #{channel_gate_forward.1} parent=0 // pred_check
    _
  $region19: #{channel_gate_forward.1} parent=0 // pred_check_branch
    %19 = sbr.rel (0) target = $region21
  $region20: #{channel_gate_forward.1} parent=0 // pred_region
    _
  $region21: #{channel_gate_forward.1} parent=0 // pred_fallthru
    _
  %v20 = vld [vmem:[%s0] sm:$0xff]
  %v21 = vld [vmem:[%s0 + $0x8] sm:$0xff]
  %v22 = vld [vmem:[%s0 + $0x10] sm:$0xff]
  %v23 = vld [vmem:[%s0 + $0x18] sm:$0xff]
  %v24 = vld [vmem:[%s0 + $0x20] sm:$0xff]
  %v25 = vld [vmem:[%s0 + $0x28] sm:$0xff]
  %v26 = vld [vmem:[%s0 + $0x30] sm:$0xff]
  %v27 = vld [vmem:[%s0 + $0x38] sm:$0xff]
  %v28 = vld [vmem:[%s0 + $0x40] sm:$0xff]
  %v29 = vld [vmem:[%s0 + $0x48] sm:$0xff]
  %v30 = vld [vmem:[%s0 + $0x50] sm:$0xff]
  %v31 = vld [vmem:[%s0 + $0x58] sm:$0xff]
  %v32 = vld [vmem:[%s0 + $0x60] sm:$0xff]
  %v33 = vld [vmem:[%s0 + $0x68] sm:$0xff]
  %v34 = vld [vmem:[%s0 + $0x70] sm:$0xff]
  %v35 = vld [vmem:[%s0 + $0x78] sm:$0xff]
  %v36 = vld [vmem:[%s0 + $0x80] sm:$0xff]
  %v37 = vld [vmem:[%s0 + $0x88] sm:$0xff]
  %v38 = vld [vmem:[%s0 + $0x90] sm:$0xff]
  %v39 = vld [vmem:[%s0 + $0x98] sm:$0xff]
  %v40 = vld [vmem:[%s0 + $0xa0] sm:$0xff]
  %v41 = vld [vmem:[%s0 + $0xa8] sm:$0xff]
  %v42 = vld [vmem:[%s0 + $0xb0] sm:$0xff]
  %v43 = vld [vmem:[%s0 + $0xb8] sm:$0xff]
  %v44 = vld [vmem:[%s0 + $0xc0] sm:$0xff]
  %v45 = vld [vmem:[%s0 + $0xc8] sm:$0xff]
  %v46 = vld [vmem:[%s0 + $0xd0] sm:$0xff]
  %v47 = vld [vmem:[%s0 + $0xd8] sm:$0xff]
  %v48 = vld [vmem:[%s0 + $0xe0] sm:$0xff]
  %v49 = vld [vmem:[%s0 + $0xe8] sm:$0xff]
  %v50 = vld [vmem:[%s0 + $0xf0] sm:$0xff]
  %v51 = vld [vmem:[%s0 + $0xf8] sm:$0xff]
  %v52 = vld [vmem:[%s0 + $0x100] sm:$0xff]
  %v53 = vld [vmem:[%s0 + $0x108] sm:$0xff]
  %v54 = vld [vmem:[%s0 + $0x110] sm:$0xff]
  %v55 = vld [vmem:[%s0 + $0x118] sm:$0xff]
  %v56 = vld [vmem:[%s0 + $0x120] sm:$0xff]
  %v57 = vld [vmem:[%s0 + $0x128] sm:$0xff]
  %v58 = vld [vmem:[%s0 + $0x130] sm:$0xff]
  %v59 = vld [vmem:[%s0 + $0x138] sm:$0xff]
  %v60 = vld [vmem:[%s0 + $0x140] sm:$0xff]
  %v61 = vld [vmem:[%s0 + $0x148] sm:$0xff]
  %v62 = vld [vmem:[%s0 + $0x150] sm:$0xff]
  %v63 = vld [vmem:[%s0 + $0x158] sm:$0xff]
  %v64 = vld [vmem:[%s0 + $0x160] sm:$0xff]
  %v65 = vld [vmem:[%s0 + $0x168] sm:$0xff]
  %v66 = vld [vmem:[%s0 + $0x170] sm:$0xff]
  %v67 = vld [vmem:[%s0 + $0x178] sm:$0xff]
  %vm68 = vcmask 121856
  %v69 = vsel %vm68, %v21, 0.0
  %v70 = vadd.f32 %v20, %v69
  %71 = vadd.xlane.f32.xlu0 %v70
  %v72 = vpop.xlane.xlu0 %71
  %v73 = vsel %vm68, %v23, 0.0
  %v74 = vadd.f32 %v22, %v73
  %75 = vadd.xlane.f32.xlu0 %v74
  %v76 = vpop.xlane.xlu0 %75
  %v77 = vsel %vm68, %v25, 0.0
  %v78 = vadd.f32 %v24, %v77
  %79 = vadd.xlane.f32.xlu0 %v78
  %v80 = vpop.xlane.xlu0 %79
  %v81 = vsel %vm68, %v27, 0.0
  %v82 = vadd.f32 %v26, %v81
  %83 = vadd.xlane.f32.xlu0 %v82
  %v84 = vpop.xlane.xlu0 %83
  %v85 = vsel %vm68, %v29, 0.0
  %v86 = vadd.f32 %v28, %v85
  %87 = vadd.xlane.f32.xlu0 %v86
  %v88 = vpop.xlane.xlu0 %87
  %v89 = vsel %vm68, %v31, 0.0
  %v90 = vadd.f32 %v30, %v89
  %91 = vadd.xlane.f32.xlu0 %v90
  %v92 = vpop.xlane.xlu0 %91
  %v93 = vsel %vm68, %v33, 0.0
  %v94 = vadd.f32 %v32, %v93
  %95 = vadd.xlane.f32.xlu0 %v94
  %v96 = vpop.xlane.xlu0 %95
  %v97 = vsel %vm68, %v35, 0.0
  %v98 = vadd.f32 %v34, %v97
  %99 = vadd.xlane.f32.xlu0 %v98
  %v100 = vpop.xlane.xlu0 %99
  %v101 = vsel %vm68, %v37, 0.0
  %v102 = vadd.f32 %v36, %v101
  %103 = vadd.xlane.f32.xlu0 %v102
  %v104 = vpop.xlane.xlu0 %103
  %v105 = vsel %vm68, %v39, 0.0
  %v106 = vadd.f32 %v38, %v105
  %107 = vadd.xlane.f32.xlu0 %v106
  %v108 = vpop.xlane.xlu0 %107
  %v109 = vsel %vm68, %v41, 0.0
  %v110 = vadd.f32 %v40, %v109
  %111 = vadd.xlane.f32.xlu0 %v110
  %v112 = vpop.xlane.xlu0 %111
  %v113 = vsel %vm68, %v43, 0.0
  %v114 = vadd.f32 %v42, %v113
  %115 = vadd.xlane.f32.xlu0 %v114
  %v116 = vpop.xlane.xlu0 %115
  %v117 = vsel %vm68, %v45, 0.0
  %v118 = vadd.f32 %v44, %v117
  %119 = vadd.xlane.f32.xlu0 %v118
  %v120 = vpop.xlane.xlu0 %119
  %v121 = vsel %vm68, %v47, 0.0
  %v122 = vadd.f32 %v46, %v121
  %123 = vadd.xlane.f32.xlu0 %v122
  %v124 = vpop.xlane.xlu0 %123
  %v125 = vsel %vm68, %v49, 0.0
  %v126 = vadd.f32 %v48, %v125
  %127 = vadd.xlane.f32.xlu0 %v126
  %v128 = vpop.xlane.xlu0 %127
  %v129 = vsel %vm68, %v51, 0.0
  %v130 = vadd.f32 %v50, %v129
  %131 = vadd.xlane.f32.xlu0 %v130
  %v132 = vpop.xlane.xlu0 %131
  %v133 = vsel %vm68, %v53, 0.0
  %v134 = vadd.f32 %v52, %v133
  %135 = vadd.xlane.f32.xlu0 %v134
  %v136 = vpop.xlane.xlu0 %135
  %v137 = vsel %vm68, %v55, 0.0
  %v138 = vadd.f32 %v54, %v137
  %139 = vadd.xlane.f32.xlu0 %v138
  %v140 = vpop.xlane.xlu0 %139
  %v141 = vsel %vm68, %v57, 0.0
  %v142 = vadd.f32 %v56, %v141
  %143 = vadd.xlane.f32.xlu0 %v142
  %v144 = vpop.xlane.xlu0 %143
  %v145 = vsel %vm68, %v59, 0.0
  %v146 = vadd.f32 %v58, %v145
  %147 = vadd.xlane.f32.xlu0 %v146
  %v148 = vpop.xlane.xlu0 %147
  %v149 = vsel %vm68, %v61, 0.0
  %v150 = vadd.f32 %v60, %v149
  %151 = vadd.xlane.f32.xlu0 %v150
  %v152 = vpop.xlane.xlu0 %151
  %v153 = vsel %vm68, %v63, 0.0
  %v154 = vadd.f32 %v62, %v153
  %155 = vadd.xlane.f32.xlu0 %v154
  %v156 = vpop.xlane.xlu0 %155
  %v157 = vsel %vm68, %v65, 0.0
  %v158 = vadd.f32 %v64, %v157
  %159 = vadd.xlane.f32.xlu0 %v158
  %v160 = vpop.xlane.xlu0 %159
  %v161 = vsel %vm68, %v67, 0.0
  %v162 = vadd.f32 %v66, %v161
  %163 = vadd.xlane.f32.xlu0 %v162
  %v164 = vpop.xlane.xlu0 %163
  %v165 = vld [vmem:[%s1] sm:$0xff]
  %v166 = vld [vmem:[%s1 + $0x8] sm:$0xff]
  %v167 = vld [vmem:[%s1 + $0x10] sm:$0xff]
  %v168 = vld [vmem:[%s1 + $0x18] sm:$0xff]
  %v169 = vld [vmem:[%s2] sm:$0x1]
  %v171 = vlaneseq
  %v172 = vshrl.u32 %v171, 7
  %v173 = vsub.s32 0, %v172
  %v174 = vrot.slane %v169, %v173
  %v200 = vlaneseq
  %v201 = vand.u32 %v200, 127
  %v202 = vlaneseq
  %v203 = vshrl.u32 %v202, 7
  %v204 = vsub.s32 %v201, %v203
  %v205 = vrot.slane %v72, %v204
  %v206 = vadd.s32 %v201, 4294967288
  %v207 = vlaneseq
  %v208 = vshrl.u32 %v207, 7
  %v209 = vsub.s32 %v206, %v208
  %v210 = vrot.slane %v76, %v209
  %vm211 = vcmask 130112
  %v212 = vsel %vm211, %v210, %v205
  %v213 = vadd.s32 %v201, 4294967280
  %v214 = vlaneseq
  %v215 = vshrl.u32 %v214, 7
  %v216 = vsub.s32 %v213, %v215
  %v217 = vrot.slane %v80, %v216
  %vm218 = vcmask 195712
  %v219 = vsel %vm218, %v217, %v212
  %v220 = vadd.s32 %v201, 4294967272
  %v221 = vlaneseq
  %v222 = vshrl.u32 %v221, 7
  %v223 = vsub.s32 %v220, %v222
  %v224 = vrot.slane %v84, %v223
  %vm225 = vcmask 261312
  %v226 = vsel %vm225, %v224, %v219
  %v227 = vlaneseq
  %v228 = vshrl.u32 %v227, 7
  %v229 = vsub.s32 %v201, %v228
  %v230 = vrot.slane %v88, %v229
  %v231 = vlaneseq
  %v232 = vshrl.u32 %v231, 7
  %v233 = vsub.s32 %v206, %v232
  %v234 = vrot.slane %v92, %v233
  %v235 = vsel %vm211, %v234, %v230
  %v236 = vlaneseq
  %v237 = vshrl.u32 %v236, 7
  %v238 = vsub.s32 %v213, %v237
  %v239 = vrot.slane %v96, %v238
  %v240 = vsel %vm218, %v239, %v235
  %v241 = vlaneseq
  %v242 = vshrl.u32 %v241, 7
  %v243 = vsub.s32 %v220, %v242
  %v244 = vrot.slane %v100, %v243
  %v245 = vsel %vm225, %v244, %v240
  %v246 = vlaneseq
  %v247 = vshrl.u32 %v246, 7
  %v248 = vsub.s32 %v201, %v247
  %v249 = vrot.slane %v104, %v248
  %v250 = vlaneseq
  %v251 = vshrl.u32 %v250, 7
  %v252 = vsub.s32 %v206, %v251
  %v253 = vrot.slane %v108, %v252
  %v254 = vsel %vm211, %v253, %v249
  %v255 = vlaneseq
  %v256 = vshrl.u32 %v255, 7
  %v257 = vsub.s32 %v213, %v256
  %v258 = vrot.slane %v112, %v257
  %v259 = vsel %vm218, %v258, %v254
  %v260 = vlaneseq
  %v261 = vshrl.u32 %v260, 7
  %v262 = vsub.s32 %v220, %v261
  %v263 = vrot.slane %v116, %v262
  %v264 = vsel %vm225, %v263, %v259
  %v265 = vlaneseq
  %v266 = vshrl.u32 %v265, 7
  %v267 = vsub.s32 %v201, %v266
  %v268 = vrot.slane %v120, %v267
  %v269 = vlaneseq
  %v270 = vshrl.u32 %v269, 7
  %v271 = vsub.s32 %v206, %v270
  %v272 = vrot.slane %v124, %v271
  %v273 = vsel %vm211, %v272, %v268
  %v274 = vlaneseq
  %v275 = vshrl.u32 %v274, 7
  %v276 = vsub.s32 %v213, %v275
  %v277 = vrot.slane %v128, %v276
  %v278 = vsel %vm218, %v277, %v273
  %v279 = vlaneseq
  %v280 = vshrl.u32 %v279, 7
  %v281 = vsub.s32 %v220, %v280
  %v282 = vrot.slane %v132, %v281
  %v283 = vsel %vm225, %v282, %v278
  %v284 = vlaneseq
  %v285 = vshrl.u32 %v284, 7
  %v286 = vsub.s32 %v201, %v285
  %v287 = vrot.slane %v136, %v286
  %v288 = vlaneseq
  %v289 = vshrl.u32 %v288, 7
  %v290 = vsub.s32 %v206, %v289
  %v291 = vrot.slane %v140, %v290
  %v292 = vsel %vm211, %v291, %v287
  %v293 = vlaneseq
  %v294 = vshrl.u32 %v293, 7
  %v295 = vsub.s32 %v213, %v294
  %v296 = vrot.slane %v144, %v295
  %v297 = vsel %vm218, %v296, %v292
  %v298 = vlaneseq
  %v299 = vshrl.u32 %v298, 7
  %v300 = vsub.s32 %v220, %v299
  %v301 = vrot.slane %v148, %v300
  %v302 = vsel %vm225, %v301, %v297
  %v303 = vlaneseq
  %v304 = vshrl.u32 %v303, 7
  %v305 = vsub.s32 %v201, %v304
  %v306 = vrot.slane %v152, %v305
  %v307 = vlaneseq
  %v308 = vshrl.u32 %v307, 7
  %v309 = vsub.s32 %v206, %v308
  %v310 = vrot.slane %v156, %v309
  %v311 = vsel %vm211, %v310, %v306
  %v312 = vlaneseq
  %v313 = vshrl.u32 %v312, 7
  %v314 = vsub.s32 %v213, %v313
  %v315 = vrot.slane %v160, %v314
  %v316 = vsel %vm218, %v315, %v311
  %v317 = vlaneseq
  %v318 = vshrl.u32 %v317, 7
  %v319 = vsub.s32 %v220, %v318
  %v320 = vrot.slane %v164, %v319
  %v321 = vsel %vm225, %v320, %v316
  %vm322 = vcmask 1041409
  %v323 = vsel %vm322, %v245, %v226
  %vm324 = vcmask 1042434
  %v325 = vsel %vm324, %v264, %v323
  %vm326 = vcmask 1043459
  %v327 = vsel %vm326, %v283, %v325
  %vm328 = vcmask 1044484
  %v329 = vsel %vm328, %v302, %v327
  %vm330 = vcmask 1045509
  %v331 = vsel %vm330, %v321, %v329
  %vm332 = vcmask 261120
  %v333 = vsel %vm332, %v331, 0
  %335 = vmatprep.subr.mxu0 0.0
  %336 = vmatpush1.msra.mxu0 0.0
  %337 = vmatprep.subr.mxu0 0.0
  %338 = vmatpush1.msra.mxu0 0.0
  %339 = vmatprep.subr.mxu0 0.0
  %340 = vmatpush1.msra.mxu0 0.0
  %341 = vmatprep.subr.mxu0 0.0
  %342 = vmatpush1.msra.mxu0 0.0
  %343 = vmatprep.subr.mxu0 0.0
  %344 = vmatpush1.msra.mxu0 0.0
  %345 = vmatprep.subr.mxu0 0.0
  %346 = vmatpush1.msra.mxu0 0.0
  %347 = vmatprep.subr.mxu0 0.0
  %348 = vmatpush1.msra.mxu0 0.0
  %349 = vmatprep.subr.mxu0 0.0
  %350 = vmatpush1.msra.mxu0 0.0
  %351 = vmatprep.subr.mxu0 0.0
  %352 = vmatpush1.msra.mxu0 0.0
  %353 = vmatprep.subr.mxu0 0.0
  %354 = vmatpush1.msra.mxu0 0.0
  %355 = vmatprep.subr.mxu0 0.0
  %356 = vmatpush1.msra.mxu0 0.0
  %357 = vmatprep.subr.mxu0 0.0
  %358 = vmatpush1.msra.mxu0 0.0
  %359 = vmatprep.subr.mxu0 0.0
  %360 = vmatpush1.msra.mxu0 %v168
  %361 = vmatprep.subr.mxu0 0.0
  %362 = vmatpush1.msra.mxu0 %v167
  %363 = vmatprep.subr.mxu0 0.0
  %364 = vmatpush1.msra.mxu0 %v166
  %365 = vmatprep.subr.mxu0 0.0
  %366 = vmatpush1.msra.mxu0 %v165
  %367 = vmatprep.subr.mxu0 0.0
  %368 = vmatpush2.msra.mxu0 0.0
  %369 = vmatprep.subr.mxu0 0.0
  %370 = vmatpush2.msra.mxu0 0.0
  %371 = vmatprep.subr.mxu0 0.0
  %372 = vmatpush2.msra.mxu0 0.0
  %373 = vmatprep.subr.mxu0 0.0
  %374 = vmatpush2.msra.mxu0 0.0
  %375 = vmatprep.subr.mxu0 0.0
  %376 = vmatpush2.msra.mxu0 0.0
  %377 = vmatprep.subr.mxu0 0.0
  %378 = vmatpush2.msra.mxu0 0.0
  %379 = vmatprep.subr.mxu0 0.0
  %380 = vmatpush2.msra.mxu0 0.0
  %381 = vmatprep.subr.mxu0 0.0
  %382 = vmatpush2.msra.mxu0 0.0
  %383 = vmatprep.subr.mxu0 0.0
  %384 = vmatpush2.msra.mxu0 0.0
  %385 = vmatprep.subr.mxu0 0.0
  %386 = vmatpush2.msra.mxu0 0.0
  %387 = vmatprep.subr.mxu0 0.0
  %388 = vmatpush2.msra.mxu0 0.0
  %389 = vmatprep.subr.mxu0 0.0
  %390 = vmatpush2.msra.mxu0 0.0
  %391 = vmatprep.subr.mxu0 0.0
  %392 = vmatpush2.msra.mxu0 0.0
  %393 = vmatprep.subr.mxu0 0.0
  %394 = vmatpush2.msra.mxu0 0.0
  %395 = vmatprep.subr.mxu0 0.0
  %396 = vmatpush2.msra.mxu0 0.0
  %397 = vmatprep.subr.mxu0 0.0
  %398 = vmatpush2.msra.mxu0 0.0
  %399 = vmatprep.mubr.f32.mxu0 0.0
  %400 = vmatmul.mubr.f32.gmra.mxu0 %v333
  %v401 = vpop.f32.mrf.mxu0
  %v402 = vadd.f32 %v174, %v401
  %v403 = vpop.f32.mrf.mxu0
  %404 = vdwg.mxu0
  %v405 = vmax.f32 %v402, 0.0
  %v406 = vld [vmem:[%s3] sm:$0x3]
  %v407 = vld [vmem:[%s4] sm:$0x1]
  %v409 = vlaneseq
  %v410 = vshrl.u32 %v409, 7
  %v411 = vsub.s32 0, %v410
  %v412 = vrot.slane %v407, %v411
  %vm414 = vcmask 15360
  %v416 = vsel %vm414, %v405, 0
  %vm418 = vcmask 1041408
  %v420 = vsel %vm418, %v406, 0
  %422 = vmatprep.subr.mxu0 0.0
  %423 = vmatpush1.msra.mxu0 0.0
  %424 = vmatprep.subr.mxu0 0.0
  %425 = vmatpush1.msra.mxu0 0.0
  %426 = vmatprep.subr.mxu0 0.0
  %427 = vmatpush1.msra.mxu0 0.0
  %428 = vmatprep.subr.mxu0 0.0
  %429 = vmatpush1.msra.mxu0 0.0
  %430 = vmatprep.subr.mxu0 0.0
  %431 = vmatpush1.msra.mxu0 0.0
  %432 = vmatprep.subr.mxu0 0.0
  %433 = vmatpush1.msra.mxu0 0.0
  %434 = vmatprep.subr.mxu0 0.0
  %435 = vmatpush1.msra.mxu0 0.0
  %436 = vmatprep.subr.mxu0 0.0
  %437 = vmatpush1.msra.mxu0 0.0
  %438 = vmatprep.subr.mxu0 0.0
  %439 = vmatpush1.msra.mxu0 0.0
  %440 = vmatprep.subr.mxu0 0.0
  %441 = vmatpush1.msra.mxu0 0.0
  %442 = vmatprep.subr.mxu0 0.0
  %443 = vmatpush1.msra.mxu0 0.0
  %444 = vmatprep.subr.mxu0 0.0
  %445 = vmatpush1.msra.mxu0 0.0
  %446 = vmatprep.subr.mxu0 0.0
  %447 = vmatpush1.msra.mxu0 0.0
  %448 = vmatprep.subr.mxu0 0.0
  %449 = vmatpush1.msra.mxu0 0.0
  %450 = vmatprep.subr.mxu0 0.0
  %451 = vmatpush1.msra.mxu0 0.0
  %452 = vmatprep.subr.mxu0 0.0
  %453 = vmatpush1.msra.mxu0 %v420
  %454 = vmatprep.subr.mxu0 0.0
  %455 = vmatpush2.msra.mxu0 0.0
  %456 = vmatprep.subr.mxu0 0.0
  %457 = vmatpush2.msra.mxu0 0.0
  %458 = vmatprep.subr.mxu0 0.0
  %459 = vmatpush2.msra.mxu0 0.0
  %460 = vmatprep.subr.mxu0 0.0
  %461 = vmatpush2.msra.mxu0 0.0
  %462 = vmatprep.subr.mxu0 0.0
  %463 = vmatpush2.msra.mxu0 0.0
  %464 = vmatprep.subr.mxu0 0.0
  %465 = vmatpush2.msra.mxu0 0.0
  %466 = vmatprep.subr.mxu0 0.0
  %467 = vmatpush2.msra.mxu0 0.0
  %468 = vmatprep.subr.mxu0 0.0
  %469 = vmatpush2.msra.mxu0 0.0
  %470 = vmatprep.subr.mxu0 0.0
  %471 = vmatpush2.msra.mxu0 0.0
  %472 = vmatprep.subr.mxu0 0.0
  %473 = vmatpush2.msra.mxu0 0.0
  %474 = vmatprep.subr.mxu0 0.0
  %475 = vmatpush2.msra.mxu0 0.0
  %476 = vmatprep.subr.mxu0 0.0
  %477 = vmatpush2.msra.mxu0 0.0
  %478 = vmatprep.subr.mxu0 0.0
  %479 = vmatpush2.msra.mxu0 0.0
  %480 = vmatprep.subr.mxu0 0.0
  %481 = vmatpush2.msra.mxu0 0.0
  %482 = vmatprep.subr.mxu0 0.0
  %483 = vmatpush2.msra.mxu0 0.0
  %484 = vmatprep.subr.mxu0 0.0
  %485 = vmatpush2.msra.mxu0 0.0
  %486 = vmatprep.mubr.f32.mxu0 0.0
  %487 = vmatmul.mubr.f32.gmra.mxu0 %v416
  %v488 = vpop.f32.mrf.mxu0
  %v489 = vadd.f32 %v412, %v488
  %v490 = vpop.f32.mrf.mxu0
  %491 = vdwg.mxu0
  %v492 = vxor.u32 %v489, 2147483648
  %v493 = vmul.f32 %v492, 1.442695
  %v494 = vpow.pop %v493
  %v495 = vadd.f32 %v494, 1.0
  %v496 = vrcp.pop %v495
  %v497 = vmul.f32 1.0, %v496
  %v498 = vlaneseq
  %v499 = vshrl.u32 %v498, 7
  %v500 = vsub.s32 0, %v499
  %v501 = vrot.slane %v497, %v500
  %503 = vbcast.lane.b32.xlu0 %v501, 256
  %v504 = vpop.permute.xlu0 %503
  %s506 = sor.u32 256, 8
  %507 = vbcast.lane.b32.xlu0 %v501, %s506
  %v508 = vpop.permute.xlu0 %507
  %s510 = sor.u32 256, 16
  %511 = vbcast.lane.b32.xlu0 %v501, %s510
  %v512 = vpop.permute.xlu0 %511
  %s514 = sor.u32 256, 24
  %515 = vbcast.lane.b32.xlu0 %v501, %s514
  %v516 = vpop.permute.xlu0 %515
  %v517 = vlaneseq
  %v518 = vshrl.u32 %v517, 7
  %v519 = vsub.s32 1, %v518
  %v520 = vrot.slane %v497, %v519
  %522 = vbcast.lane.b32.xlu0 %v520, 256
  %v523 = vpop.permute.xlu0 %522
  %s525 = sor.u32 256, 8
  %526 = vbcast.lane.b32.xlu0 %v520, %s525
  %v527 = vpop.permute.xlu0 %526
  %s529 = sor.u32 256, 16
  %530 = vbcast.lane.b32.xlu0 %v520, %s529
  %v531 = vpop.permute.xlu0 %530
  %s533 = sor.u32 256, 24
  %534 = vbcast.lane.b32.xlu0 %v520, %s533
  %v535 = vpop.permute.xlu0 %534
  %v536 = vlaneseq
  %v537 = vshrl.u32 %v536, 7
  %v538 = vsub.s32 2, %v537
  %v539 = vrot.slane %v497, %v538
  %541 = vbcast.lane.b32.xlu0 %v539, 256
  %v542 = vpop.permute.xlu0 %541
  %s544 = sor.u32 256, 8
  %545 = vbcast.lane.b32.xlu0 %v539, %s544
  %v546 = vpop.permute.xlu0 %545
  %s548 = sor.u32 256, 16
  %549 = vbcast.lane.b32.xlu0 %v539, %s548
  %v550 = vpop.permute.xlu0 %549
  %s552 = sor.u32 256, 24
  %553 = vbcast.lane.b32.xlu0 %v539, %s552
  %v554 = vpop.permute.xlu0 %553
  %v555 = vlaneseq
  %v556 = vshrl.u32 %v555, 7
  %v557 = vsub.s32 3, %v556
  %v558 = vrot.slane %v497, %v557
  %560 = vbcast.lane.b32.xlu0 %v558, 256
  %v561 = vpop.permute.xlu0 %560
  %s563 = sor.u32 256, 8
  %564 = vbcast.lane.b32.xlu0 %v558, %s563
  %v565 = vpop.permute.xlu0 %564
  %s567 = sor.u32 256, 16
  %568 = vbcast.lane.b32.xlu0 %v558, %s567
  %v569 = vpop.permute.xlu0 %568
  %s571 = sor.u32 256, 24
  %572 = vbcast.lane.b32.xlu0 %v558, %s571
  %v573 = vpop.permute.xlu0 %572
  %v574 = vlaneseq
  %v575 = vshrl.u32 %v574, 7
  %v576 = vsub.s32 4, %v575
  %v577 = vrot.slane %v497, %v576
  %579 = vbcast.lane.b32.xlu0 %v577, 256
  %v580 = vpop.permute.xlu0 %579
  %s582 = sor.u32 256, 8
  %583 = vbcast.lane.b32.xlu0 %v577, %s582
  %v584 = vpop.permute.xlu0 %583
  %s586 = sor.u32 256, 16
  %587 = vbcast.lane.b32.xlu0 %v577, %s586
  %v588 = vpop.permute.xlu0 %587
  %s590 = sor.u32 256, 24
  %591 = vbcast.lane.b32.xlu0 %v577, %s590
  %v592 = vpop.permute.xlu0 %591
  %v593 = vlaneseq
  %v594 = vshrl.u32 %v593, 7
  %v595 = vsub.s32 5, %v594
  %v596 = vrot.slane %v497, %v595
  %598 = vbcast.lane.b32.xlu0 %v596, 256
  %v599 = vpop.permute.xlu0 %598
  %s601 = sor.u32 256, 8
  %602 = vbcast.lane.b32.xlu0 %v596, %s601
  %v603 = vpop.permute.xlu0 %602
  %s605 = sor.u32 256, 16
  %606 = vbcast.lane.b32.xlu0 %v596, %s605
  %v607 = vpop.permute.xlu0 %606
  %s609 = sor.u32 256, 24
  %610 = vbcast.lane.b32.xlu0 %v596, %s609
  %v611 = vpop.permute.xlu0 %610
  %v612 = vmul.f32 %v20, %v504
  %v613 = vmul.f32 %v21, %v504
  %v614 = vmul.f32 %v22, %v508
  %v615 = vmul.f32 %v23, %v508
  %v616 = vmul.f32 %v24, %v512
  %v617 = vmul.f32 %v25, %v512
  %v618 = vmul.f32 %v26, %v516
  %v619 = vmul.f32 %v27, %v516
  %v620 = vmul.f32 %v28, %v523
  %v621 = vmul.f32 %v29, %v523
  %v622 = vmul.f32 %v30, %v527
  %v623 = vmul.f32 %v31, %v527
  %v624 = vmul.f32 %v32, %v531
  %v625 = vmul.f32 %v33, %v531
  %v626 = vmul.f32 %v34, %v535
  %v627 = vmul.f32 %v35, %v535
  %v628 = vmul.f32 %v36, %v542
  %v629 = vmul.f32 %v37, %v542
  %v630 = vmul.f32 %v38, %v546
  %v631 = vmul.f32 %v39, %v546
  %v632 = vmul.f32 %v40, %v550
  %v633 = vmul.f32 %v41, %v550
  %v634 = vmul.f32 %v42, %v554
  %v635 = vmul.f32 %v43, %v554
  %v636 = vmul.f32 %v44, %v561
  %v637 = vmul.f32 %v45, %v561
  %v638 = vmul.f32 %v46, %v565
  %v639 = vmul.f32 %v47, %v565
  %v640 = vmul.f32 %v48, %v569
  %v641 = vmul.f32 %v49, %v569
  %v642 = vmul.f32 %v50, %v573
  %v643 = vmul.f32 %v51, %v573
  %v644 = vmul.f32 %v52, %v580
  %v645 = vmul.f32 %v53, %v580
  %v646 = vmul.f32 %v54, %v584
  %v647 = vmul.f32 %v55, %v584
  %v648 = vmul.f32 %v56, %v588
  %v649 = vmul.f32 %v57, %v588
  %v650 = vmul.f32 %v58, %v592
  %v651 = vmul.f32 %v59, %v592
  %v652 = vmul.f32 %v60, %v599
  %v653 = vmul.f32 %v61, %v599
  %v654 = vmul.f32 %v62, %v603
  %v655 = vmul.f32 %v63, %v603
  %v656 = vmul.f32 %v64, %v607
  %v657 = vmul.f32 %v65, %v607
  %v658 = vmul.f32 %v66, %v611
  %v659 = vmul.f32 %v67, %v611
  %660 = vst [vmem:[%s5] sm:$0xff] %v612
  %661 = vst.msk [vmem:[%s5 + $0x8] sm:$0xff] %vm68, %v613
  %662 = vst [vmem:[%s5 + $0x10] sm:$0xff] %v614
  %663 = vst.msk [vmem:[%s5 + $0x18] sm:$0xff] %vm68, %v615
  %664 = vst [vmem:[%s5 + $0x20] sm:$0xff] %v616
  %665 = vst.msk [vmem:[%s5 + $0x28] sm:$0xff] %vm68, %v617
  %666 = vst [vmem:[%s5 + $0x30] sm:$0xff] %v618
  %667 = vst.msk [vmem:[%s5 + $0x38] sm:$0xff] %vm68, %v619
  %668 = vst [vmem:[%s5 + $0x40] sm:$0xff] %v620
  %669 = vst.msk [vmem:[%s5 + $0x48] sm:$0xff] %vm68, %v621
  %670 = vst [vmem:[%s5 + $0x50] sm:$0xff] %v622
  %671 = vst.msk [vmem:[%s5 + $0x58] sm:$0xff] %vm68, %v623
  %672 = vst [vmem:[%s5 + $0x60] sm:$0xff] %v624
  %673 = vst.msk [vmem:[%s5 + $0x68] sm:$0xff] %vm68, %v625
  %674 = vst [vmem:[%s5 + $0x70] sm:$0xff] %v626
  %675 = vst.msk [vmem:[%s5 + $0x78] sm:$0xff] %vm68, %v627
  %676 = vst [vmem:[%s5 + $0x80] sm:$0xff] %v628
  %677 = vst.msk [vmem:[%s5 + $0x88] sm:$0xff] %vm68, %v629
  %678 = vst [vmem:[%s5 + $0x90] sm:$0xff] %v630
  %679 = vst.msk [vmem:[%s5 + $0x98] sm:$0xff] %vm68, %v631
  %680 = vst [vmem:[%s5 + $0xa0] sm:$0xff] %v632
  %681 = vst.msk [vmem:[%s5 + $0xa8] sm:$0xff] %vm68, %v633
  %682 = vst [vmem:[%s5 + $0xb0] sm:$0xff] %v634
  %683 = vst.msk [vmem:[%s5 + $0xb8] sm:$0xff] %vm68, %v635
  %684 = vst [vmem:[%s5 + $0xc0] sm:$0xff] %v636
  %685 = vst.msk [vmem:[%s5 + $0xc8] sm:$0xff] %vm68, %v637
  %686 = vst [vmem:[%s5 + $0xd0] sm:$0xff] %v638
  %687 = vst.msk [vmem:[%s5 + $0xd8] sm:$0xff] %vm68, %v639
  %688 = vst [vmem:[%s5 + $0xe0] sm:$0xff] %v640
  %689 = vst.msk [vmem:[%s5 + $0xe8] sm:$0xff] %vm68, %v641
  %690 = vst [vmem:[%s5 + $0xf0] sm:$0xff] %v642
  %691 = vst.msk [vmem:[%s5 + $0xf8] sm:$0xff] %vm68, %v643
  %692 = vst [vmem:[%s5 + $0x100] sm:$0xff] %v644
  %693 = vst.msk [vmem:[%s5 + $0x108] sm:$0xff] %vm68, %v645
  %694 = vst [vmem:[%s5 + $0x110] sm:$0xff] %v646
  %695 = vst.msk [vmem:[%s5 + $0x118] sm:$0xff] %vm68, %v647
  %696 = vst [vmem:[%s5 + $0x120] sm:$0xff] %v648
  %697 = vst.msk [vmem:[%s5 + $0x128] sm:$0xff] %vm68, %v649
  %698 = vst [vmem:[%s5 + $0x130] sm:$0xff] %v650
  %699 = vst.msk [vmem:[%s5 + $0x138] sm:$0xff] %vm68, %v651
  %700 = vst [vmem:[%s5 + $0x140] sm:$0xff] %v652
  %701 = vst.msk [vmem:[%s5 + $0x148] sm:$0xff] %vm68, %v653
  %702 = vst [vmem:[%s5 + $0x150] sm:$0xff] %v654
  %703 = vst.msk [vmem:[%s5 + $0x158] sm:$0xff] %vm68, %v655
  %704 = vst [vmem:[%s5 + $0x160] sm:$0xff] %v656
  %705 = vst.msk [vmem:[%s5 + $0x168] sm:$0xff] %vm68, %v657
  %706 = vst [vmem:[%s5 + $0x170] sm:$0xff] %v658
  %707 = vst.msk [vmem:[%s5 + $0x178] sm:$0xff] %vm68, %v659
  // Predicated region
  $region22: #{channel_gate_forward.1} parent=0 // pred_check
    _
  $region23: #{channel_gate_forward.1} parent=0 // pred_check_branch
    %709 = sbr.rel (0) target = $region25
  $region24: #{channel_gate_forward.1} parent=0 // pred_region
    _
  $region25: #{channel_gate_forward.1} parent=0 // pred_fallthru
    _
  // Predicated region
  $region26: #{channel_gate_forward.1} parent=0 // pred_check
    _
  $region27: #{channel_gate_forward.1} parent=0 // pred_check_branch
    %711 = sbr.rel (0) target = $region29
  $region28: #{channel_gate_forward.1} parent=0 // pred_region
    _
  $region29: #{channel_gate_forward.1} parent=0 // pred_fallthru
    _

</llo_original>
